<compile_context>
chip_gen: v7x
topology: tpu7x:2x2x1
jax: 0.10.0
libtpu: 0.0.40
codegen_flags: <defaults>
</compile_context>

<pallas_src>
import functools

import jax
import jax.numpy as jnp
from jax.experimental import pallas as pl
from jax.experimental.pallas import tpu as pltpu


def _round_up(x, m):
    return (x + m - 1) // m * m


# ------------------------------ Pallas kernel --------------------------------


def _lstm_fused_kernel(gx_ref, whh_ref, wfc_ref, bfc_ref, out_ref, hist_ref):
    """Fused LSTM recurrence + linear head (single invocation).

    gx_ref  : (T, Bp, 4*Hp)  precomputed x @ W_ih^T + (b_ih + b_hh), time-major
    whh_ref : (Hp, 4*Hp)     hidden->gates weight, transposed, gate-block padded
    wfc_ref : (Hp, O)        FC weight, transposed, row-padded
    bfc_ref : (1, O)         FC bias
    out_ref : (L, Bp, O)     FC output for the last L timesteps
    hist_ref: (L, Bp, Hp)    VMEM scratch: last L hidden states
    """
    T, Bp, _ = gx_ref.shape
    Hp = whh_ref.shape[0]
    L = out_ref.shape[0]

    def step(t, carry):
        h, c = carry
        # Only the dependent (Bp, Hp) @ (Hp, 4Hp) matmul is on the critical path.
        gates = gx_ref[t] + jnp.dot(
            h, whh_ref[...], preferred_element_type=jnp.float32
        )  # (Bp, 4*Hp)

        # Lane-aligned gate slices (Hp is a multiple of 128).
        i_g = jax.nn.sigmoid(gates[:, 0 * Hp:1 * Hp])
        f_g = jax.nn.sigmoid(gates[:, 1 * Hp:2 * Hp])
        g_g = jnp.tanh(gates[:, 2 * Hp:3 * Hp])
        o_g = jax.nn.sigmoid(gates[:, 3 * Hp:4 * Hp])

        c_new = f_g * c + i_g * g_g
        h_new = o_g * jnp.tanh(c_new)

        # Keep only the last L hidden states.  For t < T - L the clamped write
        # lands in slot 0 and is overwritten by the correct value at
        # t == T - L, so no conditional is needed in the sequential loop.
        idx = jnp.maximum(t - (T - L), 0)
        hist_ref[idx] = h_new
        return h_new, c_new

    h0 = jnp.zeros((Bp, Hp), jnp.float32)
    c0 = jnp.zeros((Bp, Hp), jnp.float32)
    jax.lax.fori_loop(0, T, step, (h0, c0))

    # Fused FC head: one batched matmul + a single output store.
    hist = hist_ref[...].reshape(L * Bp, Hp)
    y = (
        jnp.dot(hist, wfc_ref[...], preferred_element_type=jnp.float32)
        + bfc_ref[...]
    )  # (L*Bp, O)
    out_ref[...] = y.reshape(L, Bp, out_ref.shape[2]).astype(out_ref.dtype)


# --------------------------------- wrapper -----------------------------------


@functools.partial(jax.jit, static_argnames=("output_len",))
def lstm_forward(x, w_ih, w_hh, b_ih, b_hh, w_fc, b_fc, *, output_len):
    """x: (B, T, D) float32, batch_first.  Returns (B, output_len, output_dim)."""
    B, T, D = x.shape
    H = w_hh.shape[1]
    O = w_fc.shape[0]
    L = output_len
    if not (1 <= L <= T):
        raise ValueError("output_len must be in [1, seq_len]")

    Hp = _round_up(H, 128)   # lane-aligned gate blocks
    Bp = _round_up(B, 8)     # sublane-aligned batch

    # --- gate-block-padded, transposed weights --------------------------------
    # torch: gates = x @ W_ih^T + b_ih + h @ W_hh^T + b_hh, gate order [i,f,g,o].
    # Each gate block is padded from H to Hp columns so kernel slices are
    # 128-lane aligned; padded rows/cols are zero (numerically inert).
    wih_t = jnp.transpose(
        jnp.pad(w_ih.reshape(4, H, D), ((0, 0), (0, Hp - H), (0, 0))), (2, 0, 1)
    ).reshape(D, 4 * Hp)                                          # (D, 4*Hp)
    whh_t = jnp.transpose(
        jnp.pad(w_hh.reshape(4, H, H), ((0, 0), (0, Hp - H), (0, Hp - H))),
        (2, 0, 1),
    ).reshape(Hp, 4 * Hp)                                         # (Hp, 4*Hp)
    bias = jnp.pad((b_ih + b_hh).reshape(4, H), ((0, 0), (0, Hp - H)))
    bias = bias.reshape(4 * Hp)                                   # (4*Hp,)
    wfc_t = jnp.pad(jnp.transpose(w_fc), ((0, Hp - H), (0, 0)))   # (Hp, O)

    # --- hoisted input projection (one big matmul, bias folded in) ------------
    # Computed with XLA (per review) and written time-major directly; only the
    # h @ W_hh dependent matmul stays inside the sequential loop.
    x_p = jnp.pad(x, ((0, Bp - B), (0, 0), (0, 0)))               # (Bp, T, D)
    gx = jnp.einsum("btd,dg->tbg", x_p, wih_t) + bias             # (T, Bp, 4*Hp)

    # TODO(synk): for very long T (gx no longer VMEM-resident) add a
    # time-chunked "arbitrary" grid axis and stream gx per chunk; also consider
    # bf16 matmul inputs + vmem_limit_bytes for realistic H on v7x (64 MiB VMEM).
    out = pl.pallas_call(
        _lstm_fused_kernel,
        out_shape=jax.ShapeDtypeStruct((L, Bp, O), x.dtype),
        scratch_shapes=[pltpu.VMEM((L, Bp, Hp), jnp.float32)],
    )(gx, whh_t, wfc_t, b_fc.reshape(1, O))

    # (L, Bp, O) -> (B, L, O): tiny final tensor, negligible cost.
    return jnp.transpose(out, (1, 0, 2))[:B]


# ----------------------------- deterministic init ----------------------------


def _xavier_uniform(key, shape):
    fan_out, fan_in = shape
    a = jnp.sqrt(6.0 / (fan_in + fan_out))
    return jax.random.uniform(key, shape, jnp.float32, -a, a)


def _orthogonal(key, shape):
    rows, cols = shape
    n = max(rows, cols)
    a = jax.random.normal(key, (n, min(rows, cols)), jnp.float32)
    q, r = jnp.linalg.qr(a)
    q = q * jnp.where(jnp.diag(r) >= 0, 1.0, -1.0)[None, :]
    if rows < cols:
        q = q.T
    return q[:rows, :cols]


def _reference_forward(x, w_ih, w_hh, b_ih, b_hh, w_fc, b_fc, output_len):
    """Pure-JAX reference (lax.scan) to validate the Pallas kernel."""
    B, T, D = x.shape
    H = w_hh.shape[1]

    def step(carry, x_t):
        h, c = carry
        gates = x_t @ w_ih.T + b_ih + h @ w_hh.T + b_hh
        i = jax.nn.sigmoid(gates[:, :H])
        f = jax.nn.sigmoid(gates[:, H:2 * H])
        g = jnp.tanh(gates[:, 2 * H:3 * H])
        o = jax.nn.sigmoid(gates[:, 3 * H:4 * H])
        c = f * c + i * g
        h = o * jnp.tanh(c)
        return (h, c), h

    h0 = jnp.zeros((B, H), jnp.float32)
    c0 = jnp.zeros((B, H), jnp.float32)
    _, hs = jax.lax.scan(step, (h0, c0), jnp.transpose(x, (1, 0, 2)))
    out = jnp.transpose(hs, (1, 0, 2))
    return out[:, -output_len:, :] @ w_fc.T + b_fc


# ------------------------------------ main ------------------------------------

if __name__ == "__main__":
    batch, seq_len = 2, 8
    input_dim, hidden_dim, output_dim = 16, 32, 8
    output_len = 4
    layer_dim = 1
    assert layer_dim == 1  # TODO(synk): stack the recurrence for layer_dim > 1 (module init only touches l0)

    key = jax.random.PRNGKey(0)
    k_x, k_ih, k_hh, k_fc = jax.random.split(key, 4)

    x = jax.random.normal(k_x, (batch, seq_len, input_dim), jnp.float32)

    # nn.LSTM l0 params
    w_ih = _xavier_uniform(k_ih, (4 * hidden_dim, input_dim))   # xavier_uniform_
    w_hh = _orthogonal(k_hh, (4 * hidden_dim, hidden_dim))      # orthogonal_
    b_ih = jnp.zeros((4 * hidden_dim,), jnp.float32)            # zeros_
    b_hh = jnp.zeros((4 * hidden_dim,), jnp.float32)            # zeros_

    # nn.Linear params
    w_fc = _xavier_uniform(k_fc, (output_dim, hidden_dim))      # xavier_uniform_
    b_fc = jnp.zeros((output_dim,), jnp.float32)                # zeros_

    y = lstm_forward(x, w_ih, w_hh, b_ih, b_hh, w_fc, b_fc, output_len=output_len)
    y = jax.block_until_ready(y)

    y_ref = _reference_forward(x, w_ih, w_hh, b_ih, b_hh, w_fc, b_fc, output_len)
    assert y.shape == (batch, output_len, output_dim)
    assert jnp.allclose(y, y_ref, rtol=1e-4, atol=1e-4), "Pallas vs reference mismatch"

    print("KERNEL_OK")
</pallas_src>

<mosaic_0001>
module attributes {stable_mosaic.version = 11 : i64} {
  func.func @_lstm_fused_kernel(%arg0: memref<8x8x512xf32, #tpu.memory_space<vmem>>, %arg1: memref<128x512xf32, #tpu.memory_space<vmem>>, %arg2: memref<128x8xf32, #tpu.memory_space<vmem>>, %arg3: memref<1x8xf32, #tpu.memory_space<vmem>>, %arg4: memref<4x8x8xf32, #tpu.memory_space<vmem>>, %arg5: memref<4x8x128xf32, #tpu.memory_space<vmem>>) attributes {dimension_semantics = [], scalar_prefetch = 0 : i64, scratch_operands = 1 : i64, tpu.core_type = #tpu.core_type<tc>} {
    %cst = arith.constant 0.000000e+00 : f32
    %0 = vector.broadcast %cst : f32 to vector<8x128xf32>
    %cst_0 = arith.constant 0.000000e+00 : f32
    %1 = vector.broadcast %cst_0 : f32 to vector<8x128xf32>
    %c0_i32 = arith.constant 0 : i32
    %c8_i32 = arith.constant 8 : i32
    %2 = arith.addi %c0_i32, %c8_i32 : i32
    %c1_i32 = arith.constant 1 : i32
    %3:2 = scf.for %arg6 = %c0_i32 to %2 step %c1_i32 iter_args(%arg7 = %0, %arg8 = %1) -> (vector<8x128xf32>, vector<8x128xf32>)  : i32 {
      %13 = arith.index_cast %arg6 : i32 to index
      %c0_12 = arith.constant 0 : index
      %c0_13 = arith.constant 0 : index
      %14 = vector.load %arg0[%13, %c0_12, %c0_13] : memref<8x8x512xf32, #tpu.memory_space<vmem>>, vector<1x8x512xf32>
      %15 = vector.shape_cast %14 : vector<1x8x512xf32> to vector<8x512xf32>
      %c0_14 = arith.constant 0 : index
      %c0_15 = arith.constant 0 : index
      %16 = vector.load %arg1[%c0_14, %c0_15] : memref<128x512xf32, #tpu.memory_space<vmem>>, vector<128x512xf32>
      %cst_16 = arith.constant dense<0.000000e+00> : vector<8x512xf32>
      %17 = tpu.matmul %arg7, %16, %cst_16 {dimension_numbers = #tpu.dot_dimension_numbers<[1], [0], [0], [1], [0, 0, 1, 1], [], []>} : vector<8x128xf32>, vector<128x512xf32>, vector<8x512xf32> -> vector<8x512xf32>
      %18 = arith.addf %15, %17 : vector<8x512xf32>
      %19 = vector.extract_strided_slice %18 {offsets = [0, 0], sizes = [8, 128], strides = [1, 1]} : vector<8x512xf32> to vector<8x128xf32>
      %20 = arith.negf %19 : vector<8x128xf32>
      %21 = math.exp %20 : vector<8x128xf32>
      %cst_17 = arith.constant 1.000000e+00 : f32
      %22 = vector.broadcast %cst_17 : f32 to vector<8x128xf32>
      %23 = arith.addf %22, %21 : vector<8x128xf32>
      %24 = arith.divf %22, %23 : vector<8x128xf32>
      %25 = vector.extract_strided_slice %18 {offsets = [0, 128], sizes = [8, 128], strides = [1, 1]} : vector<8x512xf32> to vector<8x128xf32>
      %26 = arith.negf %25 : vector<8x128xf32>
      %27 = math.exp %26 : vector<8x128xf32>
      %cst_18 = arith.constant 1.000000e+00 : f32
      %28 = vector.broadcast %cst_18 : f32 to vector<8x128xf32>
      %29 = arith.addf %28, %27 : vector<8x128xf32>
      %30 = arith.divf %28, %29 : vector<8x128xf32>
      %31 = vector.extract_strided_slice %18 {offsets = [0, 256], sizes = [8, 128], strides = [1, 1]} : vector<8x512xf32> to vector<8x128xf32>
      %32 = math.tanh %31 : vector<8x128xf32>
      %33 = vector.extract_strided_slice %18 {offsets = [0, 384], sizes = [8, 128], strides = [1, 1]} : vector<8x512xf32> to vector<8x128xf32>
      %34 = arith.negf %33 : vector<8x128xf32>
      %35 = math.exp %34 : vector<8x128xf32>
      %cst_19 = arith.constant 1.000000e+00 : f32
      %36 = vector.broadcast %cst_19 : f32 to vector<8x128xf32>
      %37 = arith.addf %36, %35 : vector<8x128xf32>
      %38 = arith.divf %36, %37 : vector<8x128xf32>
      %39 = arith.mulf %30, %arg8 : vector<8x128xf32>
      %40 = arith.mulf %24, %32 : vector<8x128xf32>
      %41 = arith.addf %39, %40 : vector<8x128xf32>
      %42 = math.tanh %41 : vector<8x128xf32>
      %43 = arith.mulf %38, %42 : vector<8x128xf32>
      %c4_i32 = arith.constant 4 : i32
      %44 = arith.subi %arg6, %c4_i32 : i32
      %c0_i32_20 = arith.constant 0 : i32
      %45 = arith.maxsi %44, %c0_i32_20 : i32
      %46 = arith.index_cast %45 : i32 to index
      %c0_21 = arith.constant 0 : index
      %c0_22 = arith.constant 0 : index
      %47 = vector.load %arg5[%46, %c0_21, %c0_22] : memref<4x8x128xf32, #tpu.memory_space<vmem>>, vector<1x8x128xf32>
      %48 = vector.shape_cast %47 : vector<1x8x128xf32> to vector<8x128xf32>
      %49 = vector.shape_cast %43 : vector<8x128xf32> to vector<1x8x128xf32>
      tpu.vector_store %arg5[%46, %c0_21, %c0_22], %49 {strides = array<i32>} : memref<4x8x128xf32, #tpu.memory_space<vmem>>, vector<1x8x128xf32>,
      scf.yield %43, %41 : vector<8x128xf32>, vector<8x128xf32>
    }
    %c8_i32_1 = arith.constant 8 : i32
    %c0 = arith.constant 0 : index
    %c0_2 = arith.constant 0 : index
    %c0_3 = arith.constant 0 : index
    %4 = vector.load %arg5[%c0, %c0_2, %c0_3] : memref<4x8x128xf32, #tpu.memory_space<vmem>>, vector<4x8x128xf32>
    %5 = vector.shape_cast %4 : vector<4x8x128xf32> to vector<32x128xf32>
    %c0_4 = arith.constant 0 : index
    %c0_5 = arith.constant 0 : index
    %6 = vector.load %arg2[%c0_4, %c0_5] : memref<128x8xf32, #tpu.memory_space<vmem>>, vector<128x8xf32>
    %cst_6 = arith.constant dense<0.000000e+00> : vector<32x8xf32>
    %7 = tpu.matmul %5, %6, %cst_6 {dimension_numbers = #tpu.dot_dimension_numbers<[1], [0], [0], [1], [0, 0, 1, 1], [], []>} : vector<32x128xf32>, vector<128x8xf32>, vector<32x8xf32> -> vector<32x8xf32>
    %c0_7 = arith.constant 0 : index
    %c0_8 = arith.constant 0 : index
    %8 = vector.load %arg3[%c0_7, %c0_8] : memref<1x8xf32, #tpu.memory_space<vmem>>, vector<1x8xf32>
    %9 = vector.broadcast %8 : vector<1x8xf32> to vector<32x8xf32>
    %10 = arith.addf %7, %9 : vector<32x8xf32>
    %11 = vector.shape_cast %10 : vector<32x8xf32> to vector<4x8x8xf32>
    %c0_9 = arith.constant 0 : index
    %c0_10 = arith.constant 0 : index
    %c0_11 = arith.constant 0 : index
    %12 = vector.load %arg4[%c0_9, %c0_10, %c0_11] : memref<4x8x8xf32, #tpu.memory_space<vmem>>, vector<4x8x8xf32>
    tpu.vector_store %arg4[%c0_9, %c0_10, %c0_11], %11 {strides = array<i32>} : memref<4x8x8xf32, #tpu.memory_space<vmem>>, vector<4x8x8xf32>,
    return
  }
}

</mosaic_0001>

<llo_original>
// kernel: lstm_forward.1
$region0: #{lstm_forward.1}
  #allocation0 [shape = 'u32[]', space=smem, size = 0x4, offset = 0x4, fixed_abs, tag = 'smem constant byte address 0x4 - core index']
  #allocation1 [shape = 'u32[144,128]{1,0:T(1,128)}', space=vmem, size = 0x12000, scoped, tag = 'internal scratch']
  #allocation2 [shape = 'f32[4,8,128]{2,1,0:T(8,128)}', space=vmem, size = 0x4000, scoped, tag = 'scratch operand']
  %s0 = inlined_call_operand.vmem [shape: f32[8,8,512], index: 0, kind: input, shape index: {}]
  %s1 = inlined_call_operand.vmem [shape: f32[128,512], index: 1, kind: input, shape index: {}]
  %s2 = inlined_call_operand.vmem [shape: f32[128,8], index: 2, kind: input, shape index: {}]
  %s3 = inlined_call_operand.vmem [shape: f32[1,8], index: 3, kind: input, shape index: {}]
  %s4 = inlined_call_operand.vmem [shape: f32[4,8,8], index: 4, kind: output, shape index: {}]
  %s5 = sld [smem:[#allocation0]]
  $region33: #{lstm_forward.1} parent=0
    _
  %s7 = ssub.s32 1, %s5
  %s8 = scalar_select 0, %s7, %s5
  // Predicated region
  $region2: #{lstm_forward.1} parent=0 // pred_check
    _
  $region3: #{lstm_forward.1} parent=0 // pred_check_branch
    %10 = sbr.rel (0) target = $region5
  $region4: #{lstm_forward.1} parent=0 // pred_region
    _
  $region5: #{lstm_forward.1} parent=0 // pred_fallthru
    _
  // Predicated region
  $region6: #{lstm_forward.1} parent=0 // pred_check
    _
  $region7: #{lstm_forward.1} parent=0 // pred_check_branch
    %12 = sbr.rel (0) target = $region9
  $region8: #{lstm_forward.1} parent=0 // pred_region
    _
  $region9: #{lstm_forward.1} parent=0 // pred_fallthru
    _
  // Predicated region
  $region10: #{lstm_forward.1} parent=0 // pred_check
    _
  $region11: #{lstm_forward.1} parent=0 // pred_check_branch
    %14 = sbr.rel (0) target = $region13
  $region12: #{lstm_forward.1} parent=0 // pred_region
    _
  $region13: #{lstm_forward.1} parent=0 // pred_fallthru
    _
  // Predicated region
  $region14: #{lstm_forward.1} parent=0 // pred_check
    _
  $region15: #{lstm_forward.1} parent=0 // pred_check_branch
    %16 = sbr.rel (0) target = $region17
  $region16: #{lstm_forward.1} parent=0 // pred_region
    _
  $region17: #{lstm_forward.1} parent=0 // pred_fallthru
    _
  loop: start=0, step=1, limit=8
  $region18: #{lstm_forward.1} parent=0 // loop_pre_header
    _
  $region19: #{lstm_forward.1} parent=0 // loop_header
    %s18 = sphi 0, %s22
    %p19 = scmp.ge.s32.totalorder %s18, 8
    %v23 = vphi 0.0, %v265
    %v24 = vphi 0.0, %v263
  $region20: #{lstm_forward.1} parent=0 // loop_header_branch
    %21 = sbr.rel (%p19) target = $region24
  $region21: #{lstm_forward.1} parent=0 // loop_body
    %s25 = smul.u32 %s18, 4
    %s26 = smul.addr %s25, 8
    %s27 = scalar_lea.vmem %s0, %s26
    %v28 = vld [vmem:[%s27] sm:$0xff]
    %v29 = vld [vmem:[%s27 + $0x8] sm:$0xff]
    %v30 = vld [vmem:[%s27 + $0x10] sm:$0xff]
    %v31 = vld [vmem:[%s27 + $0x18] sm:$0xff]
    %v32 = vld [vmem:[%s1] sm:$0xff]
    %v33 = vld [vmem:[%s1 + $0x8] sm:$0xff]
    %v34 = vld [vmem:[%s1 + $0x10] sm:$0xff]
    %v35 = vld [vmem:[%s1 + $0x18] sm:$0xff]
    %v36 = vld [vmem:[%s1 + $0x20] sm:$0xff]
    %v37 = vld [vmem:[%s1 + $0x28] sm:$0xff]
    %v38 = vld [vmem:[%s1 + $0x30] sm:$0xff]
    %v39 = vld [vmem:[%s1 + $0x38] sm:$0xff]
    %v40 = vld [vmem:[%s1 + $0x40] sm:$0xff]
    %v41 = vld [vmem:[%s1 + $0x48] sm:$0xff]
    %v42 = vld [vmem:[%s1 + $0x50] sm:$0xff]
    %v43 = vld [vmem:[%s1 + $0x58] sm:$0xff]
    %v44 = vld [vmem:[%s1 + $0x60] sm:$0xff]
    %v45 = vld [vmem:[%s1 + $0x68] sm:$0xff]
    %v46 = vld [vmem:[%s1 + $0x70] sm:$0xff]
    %v47 = vld [vmem:[%s1 + $0x78] sm:$0xff]
    %v48 = vld [vmem:[%s1 + $0x80] sm:$0xff]
    %v49 = vld [vmem:[%s1 + $0x88] sm:$0xff]
    %v50 = vld [vmem:[%s1 + $0x90] sm:$0xff]
    %v51 = vld [vmem:[%s1 + $0x98] sm:$0xff]
    %v52 = vld [vmem:[%s1 + $0xa0] sm:$0xff]
    %v53 = vld [vmem:[%s1 + $0xa8] sm:$0xff]
    %v54 = vld [vmem:[%s1 + $0xb0] sm:$0xff]
    %v55 = vld [vmem:[%s1 + $0xb8] sm:$0xff]
    %v56 = vld [vmem:[%s1 + $0xc0] sm:$0xff]
    %v57 = vld [vmem:[%s1 + $0xc8] sm:$0xff]
    %v58 = vld [vmem:[%s1 + $0xd0] sm:$0xff]
    %v59 = vld [vmem:[%s1 + $0xd8] sm:$0xff]
    %v60 = vld [vmem:[%s1 + $0xe0] sm:$0xff]
    %v61 = vld [vmem:[%s1 + $0xe8] sm:$0xff]
    %v62 = vld [vmem:[%s1 + $0xf0] sm:$0xff]
    %v63 = vld [vmem:[%s1 + $0xf8] sm:$0xff]
    %v64 = vld [vmem:[%s1 + $0x100] sm:$0xff]
    %v65 = vld [vmem:[%s1 + $0x108] sm:$0xff]
    %v66 = vld [vmem:[%s1 + $0x110] sm:$0xff]
    %v67 = vld [vmem:[%s1 + $0x118] sm:$0xff]
    %v68 = vld [vmem:[%s1 + $0x120] sm:$0xff]
    %v69 = vld [vmem:[%s1 + $0x128] sm:$0xff]
    %v70 = vld [vmem:[%s1 + $0x130] sm:$0xff]
    %v71 = vld [vmem:[%s1 + $0x138] sm:$0xff]
    %v72 = vld [vmem:[%s1 + $0x140] sm:$0xff]
    %v73 = vld [vmem:[%s1 + $0x148] sm:$0xff]
    %v74 = vld [vmem:[%s1 + $0x150] sm:$0xff]
    %v75 = vld [vmem:[%s1 + $0x158] sm:$0xff]
    %v76 = vld [vmem:[%s1 + $0x160] sm:$0xff]
    %v77 = vld [vmem:[%s1 + $0x168] sm:$0xff]
    %v78 = vld [vmem:[%s1 + $0x170] sm:$0xff]
    %v79 = vld [vmem:[%s1 + $0x178] sm:$0xff]
    %v80 = vld [vmem:[%s1 + $0x180] sm:$0xff]
    %v81 = vld [vmem:[%s1 + $0x188] sm:$0xff]
    %v82 = vld [vmem:[%s1 + $0x190] sm:$0xff]
    %v83 = vld [vmem:[%s1 + $0x198] sm:$0xff]
    %v84 = vld [vmem:[%s1 + $0x1a0] sm:$0xff]
    %v85 = vld [vmem:[%s1 + $0x1a8] sm:$0xff]
    %v86 = vld [vmem:[%s1 + $0x1b0] sm:$0xff]
    %v87 = vld [vmem:[%s1 + $0x1b8] sm:$0xff]
    %v88 = vld [vmem:[%s1 + $0x1c0] sm:$0xff]
    %v89 = vld [vmem:[%s1 + $0x1c8] sm:$0xff]
    %v90 = vld [vmem:[%s1 + $0x1d0] sm:$0xff]
    %v91 = vld [vmem:[%s1 + $0x1d8] sm:$0xff]
    %v92 = vld [vmem:[%s1 + $0x1e0] sm:$0xff]
    %v93 = vld [vmem:[%s1 + $0x1e8] sm:$0xff]
    %v94 = vld [vmem:[%s1 + $0x1f0] sm:$0xff]
    %v95 = vld [vmem:[%s1 + $0x1f8] sm:$0xff]
    %96 = vmatprep.subr.mxu0 %v33
    %97 = vmatpush1.msra.mxu0 %v32
    %98 = vmatprep.subr.mxu0 %v37
    %99 = vmatpush1.msra.mxu0 %v36
    %100 = vmatprep.subr.mxu0 %v41
    %101 = vmatpush1.msra.mxu0 %v40
    %102 = vmatprep.subr.mxu0 %v45
    %103 = vmatpush1.msra.mxu0 %v44
    %104 = vmatprep.subr.mxu0 %v49
    %105 = vmatpush1.msra.mxu0 %v48
    %106 = vmatprep.subr.mxu0 %v53
    %107 = vmatpush1.msra.mxu0 %v52
    %108 = vmatprep.subr.mxu0 %v57
    %109 = vmatpush1.msra.mxu0 %v56
    %110 = vmatprep.subr.mxu0 %v61
    %111 = vmatpush1.msra.mxu0 %v60
    %112 = vmatprep.subr.mxu0 %v65
    %113 = vmatpush1.msra.mxu0 %v64
    %114 = vmatprep.subr.mxu0 %v69
    %115 = vmatpush1.msra.mxu0 %v68
    %116 = vmatprep.subr.mxu0 %v73
    %117 = vmatpush1.msra.mxu0 %v72
    %118 = vmatprep.subr.mxu0 %v77
    %119 = vmatpush1.msra.mxu0 %v76
    %120 = vmatprep.subr.mxu0 %v81
    %121 = vmatpush1.msra.mxu0 %v80
    %122 = vmatprep.subr.mxu0 %v85
    %123 = vmatpush1.msra.mxu0 %v84
    %124 = vmatprep.subr.mxu0 %v89
    %125 = vmatpush1.msra.mxu0 %v88
    %126 = vmatprep.subr.mxu0 %v93
    %127 = vmatpush1.msra.mxu0 %v92
    %128 = vmatprep.subr.mxu0 0.0
    %129 = vmatpush1.msra.mxu0 0.0
    %130 = vmatprep.subr.mxu0 0.0
    %131 = vmatpush1.msra.mxu0 0.0
    %132 = vmatprep.subr.mxu0 0.0
    %133 = vmatpush1.msra.mxu0 0.0
    %134 = vmatprep.subr.mxu0 0.0
    %135 = vmatpush1.msra.mxu0 0.0
    %136 = vmatprep.subr.mxu0 0.0
    %137 = vmatpush1.msra.mxu0 0.0
    %138 = vmatprep.subr.mxu0 0.0
    %139 = vmatpush1.msra.mxu0 0.0
    %140 = vmatprep.subr.mxu0 0.0
    %141 = vmatpush1.msra.mxu0 0.0
    %142 = vmatprep.subr.mxu0 0.0
    %143 = vmatpush1.msra.mxu0 0.0
    %144 = vmatprep.subr.mxu0 0.0
    %145 = vmatpush1.msra.mxu0 0.0
    %146 = vmatprep.subr.mxu0 0.0
    %147 = vmatpush1.msra.mxu0 0.0
    %148 = vmatprep.subr.mxu0 0.0
    %149 = vmatpush1.msra.mxu0 0.0
    %150 = vmatprep.subr.mxu0 0.0
    %151 = vmatpush1.msra.mxu0 0.0
    %152 = vmatprep.subr.mxu0 0.0
    %153 = vmatpush1.msra.mxu0 0.0
    %154 = vmatprep.subr.mxu0 0.0
    %155 = vmatpush1.msra.mxu0 0.0
    %156 = vmatprep.subr.mxu0 0.0
    %157 = vmatpush1.msra.mxu0 0.0
    %158 = vmatprep.subr.mxu0 0.0
    %159 = vmatpush1.msra.mxu0 0.0
    %160 = vmatprep.mubr.f32.mxu0 0.0
    %161 = vmatmul.mubr.f32.gmra.mrb[0].mxu0 %v23
    %v162 = vpop.f32.mrb[0].mxu0
    %v163 = vadd.f32 0.0, %v162
    %v164 = vpop.f32.mrb[0].mxu0
    %v165 = vadd.f32 0.0, %v164
    %166 = vdwg.mxu0
    %167 = vmatprep.subr.mxu0 %v35
    %168 = vmatpush1.msra.mxu0 %v34
    %169 = vmatprep.subr.mxu0 %v39
    %170 = vmatpush1.msra.mxu0 %v38
    %171 = vmatprep.subr.mxu0 %v43
    %172 = vmatpush1.msra.mxu0 %v42
    %173 = vmatprep.subr.mxu0 %v47
    %174 = vmatpush1.msra.mxu0 %v46
    %175 = vmatprep.subr.mxu0 %v51
    %176 = vmatpush1.msra.mxu0 %v50
    %177 = vmatprep.subr.mxu0 %v55
    %178 = vmatpush1.msra.mxu0 %v54
    %179 = vmatprep.subr.mxu0 %v59
    %180 = vmatpush1.msra.mxu0 %v58
    %181 = vmatprep.subr.mxu0 %v63
    %182 = vmatpush1.msra.mxu0 %v62
    %183 = vmatprep.subr.mxu0 %v67
    %184 = vmatpush1.msra.mxu0 %v66
    %185 = vmatprep.subr.mxu0 %v71
    %186 = vmatpush1.msra.mxu0 %v70
    %187 = vmatprep.subr.mxu0 %v75
    %188 = vmatpush1.msra.mxu0 %v74
    %189 = vmatprep.subr.mxu0 %v79
    %190 = vmatpush1.msra.mxu0 %v78
    %191 = vmatprep.subr.mxu0 %v83
    %192 = vmatpush1.msra.mxu0 %v82
    %193 = vmatprep.subr.mxu0 %v87
    %194 = vmatpush1.msra.mxu0 %v86
    %195 = vmatprep.subr.mxu0 %v91
    %196 = vmatpush1.msra.mxu0 %v90
    %197 = vmatprep.subr.mxu0 %v95
    %198 = vmatpush1.msra.mxu0 %v94
    %199 = vmatprep.subr.mxu0 0.0
    %200 = vmatpush1.msra.mxu0 0.0
    %201 = vmatprep.subr.mxu0 0.0
    %202 = vmatpush1.msra.mxu0 0.0
    %203 = vmatprep.subr.mxu0 0.0
    %204 = vmatpush1.msra.mxu0 0.0
    %205 = vmatprep.subr.mxu0 0.0
    %206 = vmatpush1.msra.mxu0 0.0
    %207 = vmatprep.subr.mxu0 0.0
    %208 = vmatpush1.msra.mxu0 0.0
    %209 = vmatprep.subr.mxu0 0.0
    %210 = vmatpush1.msra.mxu0 0.0
    %211 = vmatprep.subr.mxu0 0.0
    %212 = vmatpush1.msra.mxu0 0.0
    %213 = vmatprep.subr.mxu0 0.0
    %214 = vmatpush1.msra.mxu0 0.0
    %215 = vmatprep.subr.mxu0 0.0
    %216 = vmatpush1.msra.mxu0 0.0
    %217 = vmatprep.subr.mxu0 0.0
    %218 = vmatpush1.msra.mxu0 0.0
    %219 = vmatprep.subr.mxu0 0.0
    %220 = vmatpush1.msra.mxu0 0.0
    %221 = vmatprep.subr.mxu0 0.0
    %222 = vmatpush1.msra.mxu0 0.0
    %223 = vmatprep.subr.mxu0 0.0
    %224 = vmatpush1.msra.mxu0 0.0
    %225 = vmatprep.subr.mxu0 0.0
    %226 = vmatpush1.msra.mxu0 0.0
    %227 = vmatprep.subr.mxu0 0.0
    %228 = vmatpush1.msra.mxu0 0.0
    %229 = vmatprep.subr.mxu0 0.0
    %230 = vmatpush1.msra.mxu0 0.0
    %231 = vmatprep.mubr.f32.mxu0 0.0
    %232 = vmatmul.mubr.f32.gmra.mrb[0].mxu0 %v23
    %v233 = vpop.f32.mrb[0].mxu0
    %v234 = vadd.f32 0.0, %v233
    %v235 = vpop.f32.mrb[0].mxu0
    %v236 = vadd.f32 0.0, %v235
    %237 = vdwg.mxu0
    %v238 = vadd.f32 %v28, %v163
    %v239 = vadd.f32 %v29, %v165
    %v240 = vadd.f32 %v30, %v234
    %v241 = vadd.f32 %v31, %v236
    %v242 = vxor.u32 %v238, 2147483648
    %v243 = vmul.f32 %v242, 1.442695
    %v244 = vpow.pop %v243
    %v245 = vadd.f32 %v244, 1.0
    %v246 = vrcp.pop %v245
    %v247 = vmul.f32 1.0, %v246
    %v248 = vxor.u32 %v239, 2147483648
    %v249 = vmul.f32 %v248, 1.442695
    %v250 = vpow.pop %v249
    %v251 = vadd.f32 %v250, 1.0
    %v252 = vrcp.pop %v251
    %v253 = vmul.f32 1.0, %v252
    %v254 = vtanh.pop %v240
    %v255 = vxor.u32 %v241, 2147483648
    %v256 = vmul.f32 %v255, 1.442695
    %v257 = vpow.pop %v256
    %v258 = vadd.f32 %v257, 1.0
    %v259 = vrcp.pop %v258
    %v260 = vmul.f32 1.0, %v259
    %v261 = vmul.f32 %v253, %v24
    %v262 = vmul.f32 %v247, %v254
    %v263 = vadd.f32 %v261, %v262
    %v264 = vtanh.pop %v263
    %v265 = vmul.f32 %v260, %v264
    %s266 = ssub.s32 %s18, 4
    %p267 = scmp.gt.s32.totalorder %s266, 0
    %s268 = scalar_select %p267, %s266, 0
    %s269 = smul.u32 %s268, 8
    %s270 = scalar_lea.vmem [#allocation2], %s269
    %271 = vst [vmem:[%s270] sm:$0xff] %v265
  $region22: #{lstm_forward.1} parent=0 // loop_footer
    %s22 = sadd.s32 1, %s18
  $region23: #{lstm_forward.1} parent=0 // loop_footer_branch
    %17 = sbr.rel target = $region19
  $region24: #{lstm_forward.1} parent=0 // loop_exit
    _
  %v272 = vld [vmem:[#allocation2] sm:$0xff]
  %v273 = vld [vmem:[#allocation2 + $0x8] sm:$0xff]
  %v274 = vld [vmem:[#allocation2 + $0x10] sm:$0xff]
  %v275 = vld [vmem:[#allocation2 + $0x18] sm:$0xff]
  %v276 = vld [vmem:[%s2] sm:$0xff]
  %v277 = vld [vmem:[%s2 + $0x8] sm:$0xff]
  %v278 = vld [vmem:[%s2 + $0x10] sm:$0xff]
  %v279 = vld [vmem:[%s2 + $0x18] sm:$0xff]
  %v280 = vld [vmem:[%s2 + $0x20] sm:$0xff]
  %v281 = vld [vmem:[%s2 + $0x28] sm:$0xff]
  %v282 = vld [vmem:[%s2 + $0x30] sm:$0xff]
  %v283 = vld [vmem:[%s2 + $0x38] sm:$0xff]
  %v284 = vld [vmem:[%s2 + $0x40] sm:$0xff]
  %v285 = vld [vmem:[%s2 + $0x48] sm:$0xff]
  %v286 = vld [vmem:[%s2 + $0x50] sm:$0xff]
  %v287 = vld [vmem:[%s2 + $0x58] sm:$0xff]
  %v288 = vld [vmem:[%s2 + $0x60] sm:$0xff]
  %v289 = vld [vmem:[%s2 + $0x68] sm:$0xff]
  %v290 = vld [vmem:[%s2 + $0x70] sm:$0xff]
  %v291 = vld [vmem:[%s2 + $0x78] sm:$0xff]
  %v292 = vld [vmem:[%s3] sm:$0x1]
  %v294 = vlaneseq
  %v295 = vshrl.u32 %v294, 7
  %v296 = vsub.s32 0, %v295
  %v297 = vrot.slane %v292, %v296
  %299 = vmatprep.subr.mxu0 0.0
  %300 = vmatpush1.msra.mxu0 %v276
  %301 = vmatprep.subr.mxu0 0.0
  %302 = vmatpush1.msra.mxu0 %v277
  %303 = vmatprep.subr.mxu0 0.0
  %304 = vmatpush1.msra.mxu0 %v278
  %305 = vmatprep.subr.mxu0 0.0
  %306 = vmatpush1.msra.mxu0 %v279
  %307 = vmatprep.subr.mxu0 0.0
  %308 = vmatpush1.msra.mxu0 %v280
  %309 = vmatprep.subr.mxu0 0.0
  %310 = vmatpush1.msra.mxu0 %v281
  %311 = vmatprep.subr.mxu0 0.0
  %312 = vmatpush1.msra.mxu0 %v282
  %313 = vmatprep.subr.mxu0 0.0
  %314 = vmatpush1.msra.mxu0 %v283
  %315 = vmatprep.subr.mxu0 0.0
  %316 = vmatpush1.msra.mxu0 %v284
  %317 = vmatprep.subr.mxu0 0.0
  %318 = vmatpush1.msra.mxu0 %v285
  %319 = vmatprep.subr.mxu0 0.0
  %320 = vmatpush1.msra.mxu0 %v286
  %321 = vmatprep.subr.mxu0 0.0
  %322 = vmatpush1.msra.mxu0 %v287
  %323 = vmatprep.subr.mxu0 0.0
  %324 = vmatpush1.msra.mxu0 %v288
  %325 = vmatprep.subr.mxu0 0.0
  %326 = vmatpush1.msra.mxu0 %v289
  %327 = vmatprep.subr.mxu0 0.0
  %328 = vmatpush1.msra.mxu0 %v290
  %329 = vmatprep.subr.mxu0 0.0
  %330 = vmatpush1.msra.mxu0 %v291
  %331 = vmatprep.subr.mxu0 0.0
  %332 = vmatpush1.msra.mxu0 0.0
  %333 = vmatprep.subr.mxu0 0.0
  %334 = vmatpush1.msra.mxu0 0.0
  %335 = vmatprep.subr.mxu0 0.0
  %336 = vmatpush1.msra.mxu0 0.0
  %337 = vmatprep.subr.mxu0 0.0
  %338 = vmatpush1.msra.mxu0 0.0
  %339 = vmatprep.subr.mxu0 0.0
  %340 = vmatpush1.msra.mxu0 0.0
  %341 = vmatprep.subr.mxu0 0.0
  %342 = vmatpush1.msra.mxu0 0.0
  %343 = vmatprep.subr.mxu0 0.0
  %344 = vmatpush1.msra.mxu0 0.0
  %345 = vmatprep.subr.mxu0 0.0
  %346 = vmatpush1.msra.mxu0 0.0
  %347 = vmatprep.subr.mxu0 0.0
  %348 = vmatpush1.msra.mxu0 0.0
  %349 = vmatprep.subr.mxu0 0.0
  %350 = vmatpush1.msra.mxu0 0.0
  %351 = vmatprep.subr.mxu0 0.0
  %352 = vmatpush1.msra.mxu0 0.0
  %353 = vmatprep.subr.mxu0 0.0
  %354 = vmatpush1.msra.mxu0 0.0
  %355 = vmatprep.subr.mxu0 0.0
  %356 = vmatpush1.msra.mxu0 0.0
  %357 = vmatprep.subr.mxu0 0.0
  %358 = vmatpush1.msra.mxu0 0.0
  %359 = vmatprep.subr.mxu0 0.0
  %360 = vmatpush1.msra.mxu0 0.0
  %361 = vmatprep.subr.mxu0 0.0
  %362 = vmatpush1.msra.mxu0 0.0
  %363 = vmatprep.mubr.f32.mxu0 0.0
  %364 = vmatmul.mubr.f32.gmra.mrb[0].mxu0 %v272
  %v365 = vpop.f32.mrb[0].mxu0
  %v366 = vadd.f32 %v297, %v365
  %v367 = vpop.f32.mrb[0].mxu0
  %368 = vmatprep.mubr.f32.mxu0 0.0
  %369 = vmatmul.mubr.f32.gmra.mrb[0].mxu0 %v273
  %v370 = vpop.f32.mrb[0].mxu0
  %v371 = vadd.f32 %v297, %v370
  %v372 = vpop.f32.mrb[0].mxu0
  %373 = vmatprep.mubr.f32.mxu0 0.0
  %374 = vmatmul.mubr.f32.gmra.mrb[0].mxu0 %v274
  %v375 = vpop.f32.mrb[0].mxu0
  %v376 = vadd.f32 %v297, %v375
  %v377 = vpop.f32.mrb[0].mxu0
  %378 = vmatprep.mubr.f32.mxu0 0.0
  %379 = vmatmul.mubr.f32.gmra.mrb[0].mxu0 %v275
  %v380 = vpop.f32.mrb[0].mxu0
  %v381 = vadd.f32 %v297, %v380
  %v382 = vpop.f32.mrb[0].mxu0
  %383 = vdwg.mxu0
  %vm384 = vcmask 64512
  %385 = vst.msk [vmem:[%s4] sm:$0xff] %vm384, %v366
  %386 = vst.msk [vmem:[%s4 + $0x8] sm:$0xff] %vm384, %v371
  %387 = vst.msk [vmem:[%s4 + $0x10] sm:$0xff] %vm384, %v376
  %388 = vst.msk [vmem:[%s4 + $0x18] sm:$0xff] %vm384, %v381
  // Predicated region
  $region25: #{lstm_forward.1} parent=0 // pred_check
    _
  $region26: #{lstm_forward.1} parent=0 // pred_check_branch
    %390 = sbr.rel (0) target = $region28
  $region27: #{lstm_forward.1} parent=0 // pred_region
    _
  $region28: #{lstm_forward.1} parent=0 // pred_fallthru
    _
  // Predicated region
  $region29: #{lstm_forward.1} parent=0 // pred_check
    _
  $region30: #{lstm_forward.1} parent=0 // pred_check_branch
    %392 = sbr.rel (0) target = $region32
  $region31: #{lstm_forward.1} parent=0 // pred_region
    _
  $region32: #{lstm_forward.1} parent=0 // pred_fallthru
    _

</llo_original>
